<compile_context>
chip_gen: v6e
topology: v6e:2x2x1
jax: 0.10.0
libtpu: 0.0.40
codegen_flags: <defaults>
</compile_context>

<pallas_src>
import jax
import jax.numpy as jnp
from jax.experimental import pallas as pl
from jax.experimental.pallas import tpu as pltpu  # noqa: F401  (kept for TPU-specific tuning hooks)


def _attn_classifier_kernel(t_ref, c_ref, w1_ref, w2_ref, bo_ref, wl_ref, bl_ref,
                            out_ref):
    """Whole-problem kernel: attention + tanh(Linear(2D->D)) + Linear(D->1)."""
    t = t_ref[...]                                   # (B, T, D) f32
    c = c_ref[...]                                   # (B, S, D) f32

    # attention scores (B, T, S) on the MXU; contraction over the last dims of
    # both operands, so no transposed copy of context is materialized.
    scores = jnp.einsum("btd,bsd->bts", t, c, preferred_element_type=jnp.float32)

    # numerically-stable softmax over the context axis (exp -> EUP slot)
    m = jnp.max(scores, axis=-1, keepdims=True)
    e = jnp.exp(scores - m)
    attn = e / jnp.sum(e, axis=-1, keepdims=True)

    # mix = attn @ context  (B, T, D)
    mix = jnp.einsum("bts,bsd->btd", attn, c, preferred_element_type=jnp.float32)

    # combined = cat([mix, target]) @ W_out^T + b_out, with W_out pre-split so
    # no in-VMEM concat is needed:  mix @ W1 + target @ W2 + b_out
    h = (jnp.einsum("btd,de->bte", mix, w1_ref[...], preferred_element_type=jnp.float32)
         + jnp.einsum("btd,de->bte", t, w2_ref[...], preferred_element_type=jnp.float32)
         + bo_ref[...])                              # bo (1,1,D) broadcast add
    h = jnp.tanh(h)                                  # (B, T, D)

    # final classifier Linear(D -> 1) on the VPU: multiply by the lane-dense
    # weight row and reduce over D — avoids a 1-lane MXU push/pop.
    logits = jnp.sum(h * wl_ref[...], axis=-1) + bl_ref[...]   # (B, T)
    out_ref[...] = logits.astype(out_ref.dtype)


def _ablation_kernel(t_ref, wl_ref, bl_ref, out_ref):
    """Ablation path: Linear(D -> 1) applied directly to target, on the VPU."""
    t = t_ref[...]                                   # (B, T, D)
    logits = jnp.sum(t * wl_ref[...], axis=-1) + bl_ref[...]   # (B, T)
    out_ref[...] = logits.astype(out_ref.dtype)


def init_params(dim, key):
    """Deterministic parameter init (shapes match the nn.Module)."""
    k1, k2, k3, k4 = jax.random.split(key, 4)
    # Attention.linear_out: nn.Linear(2*dim, dim) -> weight (dim, 2*dim), bias (dim,)
    w_out = jax.random.normal(k1, (dim, 2 * dim), jnp.float32) * (1.0 / jnp.sqrt(2.0 * dim))
    b_out = jax.random.normal(k2, (dim,), jnp.float32) * 0.01
    # EntityClassifier.linear: nn.Linear(dim, 1) -> weight (1, dim), bias (1,)
    w_lin = jax.random.normal(k3, (1, dim), jnp.float32) * (1.0 / jnp.sqrt(dim))
    b_lin = jax.random.normal(k4, (1,), jnp.float32) * 0.01
    return dict(w_out=w_out, b_out=b_out, w_lin=w_lin, b_lin=b_lin)


def entity_classifier_forward(context, target, params, ablation=False):
    """context: (B, S, D), target: (B, T, D) -> logits (B, T, 1)."""
    B, S, D = context.shape
    _, T, _ = target.shape

    # Pre-split the (D, 2D) weight so the kernel avoids an in-VMEM concat:
    # combined @ W_out^T == mix @ W_out[:, :D]^T + target @ W_out[:, D:]^T
    w1 = params["w_out"][:, :D].T                    # (D, D) acts on mix
    w2 = params["w_out"][:, D:].T                    # (D, D) acts on target
    bo = params["b_out"].reshape(1, 1, D)            # (1, 1, D)
    wl = params["w_lin"].reshape(1, 1, D)            # (1, 1, D) lane-dense row
    bl = params["b_lin"].reshape(1, 1)               # (1, 1)

    # Lane-dense 2-D output; reshaped to (B, T, 1) outside the kernel.
    out_shape = jax.ShapeDtypeStruct((B, T), jnp.float32)

    if ablation:
        out2d = pl.pallas_call(
            _ablation_kernel,
            out_shape=out_shape,
        )(target, wl, bl)
    else:
        out2d = pl.pallas_call(
            _attn_classifier_kernel,
            out_shape=out_shape,
        )(target, context, w1, w2, bo, wl, bl)

    return out2d.reshape(B, T, 1)


def _reference_forward(context, target, params, ablation=False):
    """Pure-JAX reference mirroring the PyTorch forward."""
    if ablation:
        out = target
    else:
        scores = jnp.einsum("btd,bsd->bts", target, context)
        attn = jax.nn.softmax(scores, axis=-1)
        mix = jnp.einsum("bts,bsd->btd", attn, context)
        combined = jnp.concatenate([mix, target], axis=-1)
        out = jnp.tanh(combined @ params["w_out"].T + params["b_out"])
    return out @ params["w_lin"].T + params["b_lin"]


if __name__ == "__main__":
    B, S, T, D = 2, 16, 8, 32   # batch, context len, target len, hidden dim

    key = jax.random.PRNGKey(0)
    k_ctx, k_tgt, k_par = jax.random.split(key, 3)
    context = jax.random.normal(k_ctx, (B, S, D), jnp.float32)
    target = jax.random.normal(k_tgt, (B, T, D), jnp.float32)
    params = init_params(D, k_par)

    # main (non-ablation) path
    out = entity_classifier_forward(context, target, params, ablation=False)
    out = jax.block_until_ready(out)
    ref = _reference_forward(context, target, params, ablation=False)
    assert out.shape == (B, T, 1)
    assert jnp.allclose(out, ref, atol=1e-5, rtol=1e-5)

    # ablation path
    out_ab = entity_classifier_forward(context, target, params, ablation=True)
    out_ab = jax.block_until_ready(out_ab)
    ref_ab = _reference_forward(context, target, params, ablation=True)
    assert jnp.allclose(out_ab, ref_ab, atol=1e-5, rtol=1e-5)

    print("KERNEL_OK")
</pallas_src>

<mosaic_0001>
module attributes {stable_mosaic.version = 11 : i64} {
  func.func @_attn_classifier_kernel(%arg0: memref<2x8x32xf32, #tpu.memory_space<vmem>>, %arg1: memref<2x16x32xf32, #tpu.memory_space<vmem>>, %arg2: memref<32x32xf32, #tpu.memory_space<vmem>>, %arg3: memref<32x32xf32, #tpu.memory_space<vmem>>, %arg4: memref<1x1x32xf32, #tpu.memory_space<vmem>>, %arg5: memref<1x1x32xf32, #tpu.memory_space<vmem>>, %arg6: memref<1x1xf32, #tpu.memory_space<vmem>>, %arg7: memref<2x8xf32, #tpu.memory_space<vmem>>) attributes {dimension_semantics = [], scalar_prefetch = 0 : i64, scratch_operands = 0 : i64, tpu.core_type = #tpu.core_type<tc>} {
    %c0 = arith.constant 0 : index
    %c0_0 = arith.constant 0 : index
    %c0_1 = arith.constant 0 : index
    %0 = vector.load %arg0[%c0, %c0_0, %c0_1] : memref<2x8x32xf32, #tpu.memory_space<vmem>>, vector<2x8x32xf32>
    %c0_2 = arith.constant 0 : index
    %c0_3 = arith.constant 0 : index
    %c0_4 = arith.constant 0 : index
    %1 = vector.load %arg1[%c0_2, %c0_3, %c0_4] : memref<2x16x32xf32, #tpu.memory_space<vmem>>, vector<2x16x32xf32>
    "tpu.trace_start"() <{level = 10 : i32, message = "btd,bsd->bts"}> : () -> ()
    %cst = arith.constant dense<0.000000e+00> : vector<2x8x16xf32>
    %2 = tpu.matmul %0, %1, %cst {dimension_numbers = #tpu.dot_dimension_numbers<[2], [2], [1], [1], [0, 0, 0, 1, 1, 1], [0], [0]>} : vector<2x8x32xf32>, vector<2x16x32xf32>, vector<2x8x16xf32> -> vector<2x8x16xf32>
    "tpu.trace_stop"() : () -> ()
    %cst_5 = arith.constant dense<0xFF800000> : vector<2x8xf32>
    %3 = vector.multi_reduction <maximumf>, %2, %cst_5 [2] : vector<2x8x16xf32> to vector<2x8xf32>
    %4 = vector.shape_cast %3 : vector<2x8xf32> to vector<2x8x1xf32>
    %5 = vector.broadcast %4 : vector<2x8x1xf32> to vector<2x8x16xf32>
    %6 = arith.subf %2, %5 : vector<2x8x16xf32>
    %7 = math.exp %6 : vector<2x8x16xf32>
    %cst_6 = arith.constant dense<0.000000e+00> : vector<2x8xf32>
    %8 = vector.multi_reduction <add>, %7, %cst_6 [2] : vector<2x8x16xf32> to vector<2x8xf32>
    %9 = vector.shape_cast %8 : vector<2x8xf32> to vector<2x8x1xf32>
    %10 = vector.broadcast %9 : vector<2x8x1xf32> to vector<2x8x16xf32>
    %11 = arith.divf %7, %10 : vector<2x8x16xf32>
    "tpu.trace_start"() <{level = 10 : i32, message = "bts,bsd->btd"}> : () -> ()
    %cst_7 = arith.constant dense<0.000000e+00> : vector<2x8x32xf32>
    %12 = tpu.matmul %11, %1, %cst_7 {dimension_numbers = #tpu.dot_dimension_numbers<[2], [1], [1], [2], [0, 0, 0, 1, 1, 2], [0], [0]>} : vector<2x8x16xf32>, vector<2x16x32xf32>, vector<2x8x32xf32> -> vector<2x8x32xf32>
    "tpu.trace_stop"() : () -> ()
    %c0_8 = arith.constant 0 : index
    %c0_9 = arith.constant 0 : index
    %13 = vector.load %arg2[%c0_8, %c0_9] : memref<32x32xf32, #tpu.memory_space<vmem>>, vector<32x32xf32>
    "tpu.trace_start"() <{level = 10 : i32, message = "btd,de->bte"}> : () -> ()
    %cst_10 = arith.constant dense<0.000000e+00> : vector<2x8x32xf32>
    %14 = tpu.matmul %12, %13, %cst_10 {dimension_numbers = #tpu.dot_dimension_numbers<[2], [0], [0, 1], [1], [0, 0, 0, 1, 1, 1], [], []>} : vector<2x8x32xf32>, vector<32x32xf32>, vector<2x8x32xf32> -> vector<2x8x32xf32>
    "tpu.trace_stop"() : () -> ()
    %c0_11 = arith.constant 0 : index
    %c0_12 = arith.constant 0 : index
    %15 = vector.load %arg3[%c0_11, %c0_12] : memref<32x32xf32, #tpu.memory_space<vmem>>, vector<32x32xf32>
    "tpu.trace_start"() <{level = 10 : i32, message = "btd,de->bte"}> : () -> ()
    %cst_13 = arith.constant dense<0.000000e+00> : vector<2x8x32xf32>
    %16 = tpu.matmul %0, %15, %cst_13 {dimension_numbers = #tpu.dot_dimension_numbers<[2], [0], [0, 1], [1], [0, 0, 0, 1, 1, 1], [], []>} : vector<2x8x32xf32>, vector<32x32xf32>, vector<2x8x32xf32> -> vector<2x8x32xf32>
    "tpu.trace_stop"() : () -> ()
    %17 = arith.addf %14, %16 : vector<2x8x32xf32>
    %c0_14 = arith.constant 0 : index
    %c0_15 = arith.constant 0 : index
    %c0_16 = arith.constant 0 : index
    %18 = vector.load %arg4[%c0_14, %c0_15, %c0_16] : memref<1x1x32xf32, #tpu.memory_space<vmem>>, vector<1x1x32xf32>
    %19 = vector.broadcast %18 : vector<1x1x32xf32> to vector<2x8x32xf32>
    %20 = arith.addf %17, %19 : vector<2x8x32xf32>
    %21 = math.tanh %20 : vector<2x8x32xf32>
    %c0_17 = arith.constant 0 : index
    %c0_18 = arith.constant 0 : index
    %c0_19 = arith.constant 0 : index
    %22 = vector.load %arg5[%c0_17, %c0_18, %c0_19] : memref<1x1x32xf32, #tpu.memory_space<vmem>>, vector<1x1x32xf32>
    %23 = vector.broadcast %22 : vector<1x1x32xf32> to vector<2x8x32xf32>
    %24 = arith.mulf %21, %23 : vector<2x8x32xf32>
    %cst_20 = arith.constant dense<0.000000e+00> : vector<2x8xf32>
    %25 = vector.multi_reduction <add>, %24, %cst_20 [2] : vector<2x8x32xf32> to vector<2x8xf32>
    %c0_21 = arith.constant 0 : index
    %c0_22 = arith.constant 0 : index
    %26 = vector.load %arg6[%c0_21, %c0_22] : memref<1x1xf32, #tpu.memory_space<vmem>>, vector<1x1xf32>
    %27 = vector.broadcast %26 : vector<1x1xf32> to vector<2x8xf32>
    %28 = arith.addf %25, %27 : vector<2x8xf32>
    %c0_23 = arith.constant 0 : index
    %c0_24 = arith.constant 0 : index
    %29 = vector.load %arg7[%c0_23, %c0_24] : memref<2x8xf32, #tpu.memory_space<vmem>>, vector<2x8xf32>
    tpu.vector_store %arg7[%c0_23, %c0_24], %28 {strides = array<i32>} : memref<2x8xf32, #tpu.memory_space<vmem>>, vector<2x8xf32>,
    return
  }
}

</mosaic_0001>

<llo_original>
// kernel: tpu_custom_call.1
$region0: #{tpu_custom_call.1}
  #allocation0 [shape = 'u32[]', space=smem, size = 0x4, offset = 0x4, fixed_abs, tag = 'smem constant byte address 0x4 - core index']
  #allocation1 [shape = 'u32[144,128]{1,0:T(1,128)}', space=vmem, size = 0x12000, scoped, tag = 'internal scratch']
  #allocation2 [shape = 'f32[1,1]{1,0:T(1,128)S(1)}', space=vmem, size = 0x200, scoped, tag = 'scoped memory for tpu_custom_call.1']
  %s0 = inlined_call_operand.hbm [shape: f32[2,8,32], index: 0, kind: input, shape index: {}]
  %s1 = inlined_call_operand.hbm [shape: f32[2,16,32], index: 1, kind: input, shape index: {}]
  %s2 = inlined_call_operand.hbm [shape: f32[32,32], index: 2, kind: input, shape index: {}]
  %s3 = inlined_call_operand.hbm [shape: f32[32,32], index: 3, kind: input, shape index: {}]
  %s4 = inlined_call_operand.vmem [shape: f32[1,1,32], index: 4, kind: input, shape index: {}]
  %s5 = inlined_call_operand.vmem [shape: f32[1,1,32], index: 5, kind: input, shape index: {}]
  %s6 = inlined_call_operand.<no memory space> [shape: f32[1,1], index: 6, kind: input, shape index: {}]
  %s7 = inlined_call_operand.hbm [shape: f32[2,8], index: 7, kind: output, shape index: {}]
  %s8 = sld [smem:[#allocation0]]
  $region54: #{tpu_custom_call.1} parent=0
    _
  %s10 = ssub.s32 1, %s8
  %s11 = scalar_select 0, %s10, %s8
  %v12 = vstv %s6
  %13 = vst [vmem:[#allocation2] sm:$0x1] %v12
  $region1: #{tpu_custom_call.1} parent=0
    #allocation3 [shape = 'u8[8192]{0}', space=vmem, size = 0x2000, scoped, tag = 'input window, operand 0, single buffered']
    #allocation4 [shape = 's32[1]{0}', space=sflag, size = 0x4, scoped, tag = 'scoped memory for tpu_custom_call.1']
    #allocation5 [shape = 's32[1]{0}', space=sflag, size = 0x4, scoped, tag = 'scoped memory for tpu_custom_call.1']
    #allocation6 [shape = 'u8[16384]{0}', space=vmem, size = 0x4000, scoped, tag = 'input window, operand 1, single buffered']
    #allocation7 [shape = 's32[1]{0}', space=sflag, size = 0x4, scoped, tag = 'scoped memory for tpu_custom_call.1']
    #allocation8 [shape = 'u8[16384]{0}', space=vmem, size = 0x4000, scoped, tag = 'input window, operand 2, single buffered']
    #allocation9 [shape = 'u8[16384]{0}', space=vmem, size = 0x4000, scoped, tag = 'input window, operand 3, single buffered']
    #allocation10 [shape = 's32[1]{0}', space=sflag, size = 0x4, scoped, tag = 'scoped memory for tpu_custom_call.1']
    #allocation11 [shape = 'u8[1024]{0}', space=vmem, size = 0x400, scoped, tag = 'output window, operand 0, single buffered']
    %14 = vsyncpa [#allocation4], 0
    %15 = vsyncpa [#allocation7], 0
    %16 = vsyncpa [#allocation10], 0
    %17 = vsyncpa [#allocation5], 0
    // Predicated region
    $region2: #{tpu_custom_call.1} parent=1 // pred_check
      _
    $region3: #{tpu_custom_call.1} parent=1 // pred_check_branch
      %19 = sbr.rel (0) target = $region5
    $region4: #{tpu_custom_call.1} parent=1 // pred_region
      %s21 = ssub.s32 256, 256
      %22 = vsyncadd [#allocation4], %s21
      %s23 = sshll.u32 [#allocation3], 4
      %s24 = int_to_ptr.vmem [resolvable:$true] %s23
      %29 = dma.hbm_to_vmem [thread:$0]  %s0, 256, %s24, [#allocation4], 128, 128, 8
    $region5: #{tpu_custom_call.1} parent=1 // pred_fallthru
      _
    // Predicated region
    $region6: #{tpu_custom_call.1} parent=1 // pred_check
      _
    $region7: #{tpu_custom_call.1} parent=1 // pred_check_branch
      %31 = sbr.rel (0) target = $region9
    $region8: #{tpu_custom_call.1} parent=1 // pred_region
      %s33 = ssub.s32 512, 512
      %34 = vsyncadd [#allocation7], %s33
      %s35 = sshll.u32 [#allocation6], 4
      %s36 = int_to_ptr.vmem [resolvable:$true] %s35
      %41 = dma.hbm_to_vmem [thread:$0]  %s1, 512, %s36, [#allocation7], 128, 128, 8
    $region9: #{tpu_custom_call.1} parent=1 // pred_fallthru
      _
    // Predicated region
    $region10: #{tpu_custom_call.1} parent=1 // pred_check
      _
    $region11: #{tpu_custom_call.1} parent=1 // pred_check_branch
      %43 = sbr.rel (0) target = $region13
    $region12: #{tpu_custom_call.1} parent=1 // pred_region
      %s45 = ssub.s32 512, 512
      %46 = vsyncadd [#allocation7], %s45
      %s47 = sshll.u32 [#allocation8], 4
      %s48 = int_to_ptr.vmem [resolvable:$true] %s47
      %53 = dma.hbm_to_vmem [thread:$0]  %s2, 512, %s48, [#allocation7], 128, 128, 8
    $region13: #{tpu_custom_call.1} parent=1 // pred_fallthru
      _
    // Predicated region
    $region14: #{tpu_custom_call.1} parent=1 // pred_check
      _
    $region15: #{tpu_custom_call.1} parent=1 // pred_check_branch
      %55 = sbr.rel (0) target = $region17
    $region16: #{tpu_custom_call.1} parent=1 // pred_region
      %s57 = ssub.s32 512, 512
      %58 = vsyncadd [#allocation10], %s57
      %s59 = sshll.u32 [#allocation9], 4
      %s60 = int_to_ptr.vmem [resolvable:$true] %s59
      %65 = dma.hbm_to_vmem [thread:$0]  %s3, 512, %s60, [#allocation10], 128, 128, 8
    $region17: #{tpu_custom_call.1} parent=1 // pred_fallthru
      _
    // Predicated region
    $region18: #{tpu_custom_call.1} parent=1 // pred_check
      _
    $region19: #{tpu_custom_call.1} parent=1 // pred_check_branch
      %67 = sbr.rel (0) target = $region21
    $region20: #{tpu_custom_call.1} parent=1 // pred_region
      _
    $region21: #{tpu_custom_call.1} parent=1 // pred_fallthru
      _
    // Predicated region
    $region22: #{tpu_custom_call.1} parent=1 // pred_check
      _
    $region23: #{tpu_custom_call.1} parent=1 // pred_check_branch
      %69 = sbr.rel (0) target = $region25
    $region24: #{tpu_custom_call.1} parent=1 // pred_region
      _
    $region25: #{tpu_custom_call.1} parent=1 // pred_fallthru
      _
    // Predicated region
    $region26: #{tpu_custom_call.1} parent=1 // pred_check
      _
    $region27: #{tpu_custom_call.1} parent=1 // pred_check_branch
      %71 = sbr.rel (0) target = $region29
    $region28: #{tpu_custom_call.1} parent=1 // pred_region
      _
    $region29: #{tpu_custom_call.1} parent=1 // pred_fallthru
      _
    // Predicated region
    $region30: #{tpu_custom_call.1} parent=1 // pred_check
      _
    $region31: #{tpu_custom_call.1} parent=1 // pred_check_branch
      %73 = sbr.rel (0) target = $region33
    $region32: #{tpu_custom_call.1} parent=1 // pred_region
      %74 = dma.done [#allocation4], 256
    $region33: #{tpu_custom_call.1} parent=1 // pred_fallthru
      _
    // Predicated region
    $region34: #{tpu_custom_call.1} parent=1 // pred_check
      _
    $region35: #{tpu_custom_call.1} parent=1 // pred_check_branch
      %76 = sbr.rel (0) target = $region37
    $region36: #{tpu_custom_call.1} parent=1 // pred_region
      %77 = dma.done [#allocation7], 512
    $region37: #{tpu_custom_call.1} parent=1 // pred_fallthru
      _
    // Predicated region
    $region38: #{tpu_custom_call.1} parent=1 // pred_check
      _
    $region39: #{tpu_custom_call.1} parent=1 // pred_check_branch
      %79 = sbr.rel (0) target = $region41
    $region40: #{tpu_custom_call.1} parent=1 // pred_region
      %80 = dma.done [#allocation7], 512
    $region41: #{tpu_custom_call.1} parent=1 // pred_fallthru
      _
    // Predicated region
    $region42: #{tpu_custom_call.1} parent=1 // pred_check
      _
    $region43: #{tpu_custom_call.1} parent=1 // pred_check_branch
      %82 = sbr.rel (0) target = $region45
    $region44: #{tpu_custom_call.1} parent=1 // pred_region
      %83 = dma.done [#allocation10], 512
    $region45: #{tpu_custom_call.1} parent=1 // pred_fallthru
      _
    %v84 = vld [vmem:[#allocation3] sm:$0xff]
    %v85 = vld [vmem:[#allocation3 + $0x8] sm:$0xff]
    %v86 = vld [vmem:[#allocation6] sm:$0xff]
    %v87 = vld [vmem:[#allocation6 + $0x8] sm:$0xff]
    %v88 = vld [vmem:[#allocation6 + $0x10] sm:$0xff]
    %v89 = vld [vmem:[#allocation6 + $0x18] sm:$0xff]
    %vm90 = vcmask 261120
    %v92 = vsel %vm90, %v84, 0
    %v95 = vsel %vm90, %v86, 0
    %v98 = vsel %vm90, %v87, 0
    %100 = vmatprep.subr.mxu0 0.0
    %101 = vmatpush1.xpose.msra.mxu0 0.0
    %102 = vmatprep.subr.mxu0 0.0
    %103 = vmatpush1.xpose.msra.mxu0 0.0
    %104 = vmatprep.subr.mxu0 0.0
    %105 = vmatpush1.xpose.msra.mxu0 0.0
    %106 = vmatprep.subr.mxu0 0.0
    %107 = vmatpush1.xpose.msra.mxu0 0.0
    %108 = vmatprep.subr.mxu0 0.0
    %109 = vmatpush1.xpose.msra.mxu0 0.0
    %110 = vmatprep.subr.mxu0 0.0
    %111 = vmatpush1.xpose.msra.mxu0 0.0
    %112 = vmatprep.subr.mxu0 0.0
    %113 = vmatpush1.xpose.msra.mxu0 0.0
    %114 = vmatprep.subr.mxu0 0.0
    %115 = vmatpush1.xpose.msra.mxu0 0.0
    %116 = vmatprep.subr.mxu0 0.0
    %117 = vmatpush1.xpose.msra.mxu0 0.0
    %118 = vmatprep.subr.mxu0 0.0
    %119 = vmatpush1.xpose.msra.mxu0 0.0
    %120 = vmatprep.subr.mxu0 0.0
    %121 = vmatpush1.xpose.msra.mxu0 0.0
    %122 = vmatprep.subr.mxu0 0.0
    %123 = vmatpush1.xpose.msra.mxu0 0.0
    %124 = vmatprep.subr.mxu0 0.0
    %125 = vmatpush1.xpose.msra.mxu0 0.0
    %126 = vmatprep.subr.mxu0 0.0
    %127 = vmatpush1.xpose.msra.mxu0 0.0
    %128 = vmatprep.subr.mxu0 0.0
    %129 = vmatpush1.xpose.msra.mxu0 %v98
    %130 = vmatprep.subr.mxu0 0.0
    %131 = vmatpush1.xpose.msra.mxu0 %v95
    %132 = vmatprep.subr.mxu0 0.0
    %133 = vmatpush2.xpose.msra.mxu0 0.0
    %134 = vmatprep.subr.mxu0 0.0
    %135 = vmatpush2.xpose.msra.mxu0 0.0
    %136 = vmatprep.subr.mxu0 0.0
    %137 = vmatpush2.xpose.msra.mxu0 0.0
    %138 = vmatprep.subr.mxu0 0.0
    %139 = vmatpush2.xpose.msra.mxu0 0.0
    %140 = vmatprep.subr.mxu0 0.0
    %141 = vmatpush2.xpose.msra.mxu0 0.0
    %142 = vmatprep.subr.mxu0 0.0
    %143 = vmatpush2.xpose.msra.mxu0 0.0
    %144 = vmatprep.subr.mxu0 0.0
    %145 = vmatpush2.xpose.msra.mxu0 0.0
    %146 = vmatprep.subr.mxu0 0.0
    %147 = vmatpush2.xpose.msra.mxu0 0.0
    %148 = vmatprep.subr.mxu0 0.0
    %149 = vmatpush2.xpose.msra.mxu0 0.0
    %150 = vmatprep.subr.mxu0 0.0
    %151 = vmatpush2.xpose.msra.mxu0 0.0
    %152 = vmatprep.subr.mxu0 0.0
    %153 = vmatpush2.xpose.msra.mxu0 0.0
    %154 = vmatprep.subr.mxu0 0.0
    %155 = vmatpush2.xpose.msra.mxu0 0.0
    %156 = vmatprep.subr.mxu0 0.0
    %157 = vmatpush2.xpose.msra.mxu0 0.0
    %158 = vmatprep.subr.mxu0 0.0
    %159 = vmatpush2.xpose.msra.mxu0 0.0
    %160 = vmatprep.subr.mxu0 0.0
    %161 = vmatpush2.xpose.msra.mxu0 0.0
    %162 = vmatprep.subr.mxu0 0.0
    %163 = vmatpush2.xpose.msra.mxu0 0.0
    %164 = vmatprep.mubr.f32.mxu0 0.0
    %165 = vmatmul.mubr.f32.gmra.mxu0 %v92
    %v166 = vpop.f32.mrf.mxu0
    %v167 = vadd.f32 0.0, %v166
    %v168 = vpop.f32.mrf.mxu0
    %169 = vdwg.mxu0
    %v171 = vsel %vm90, %v85, 0
    %v174 = vsel %vm90, %v88, 0
    %v177 = vsel %vm90, %v89, 0
    %179 = vmatprep.subr.mxu0 0.0
    %180 = vmatpush1.xpose.msra.mxu0 0.0
    %181 = vmatprep.subr.mxu0 0.0
    %182 = vmatpush1.xpose.msra.mxu0 0.0
    %183 = vmatprep.subr.mxu0 0.0
    %184 = vmatpush1.xpose.msra.mxu0 0.0
    %185 = vmatprep.subr.mxu0 0.0
    %186 = vmatpush1.xpose.msra.mxu0 0.0
    %187 = vmatprep.subr.mxu0 0.0
    %188 = vmatpush1.xpose.msra.mxu0 0.0
    %189 = vmatprep.subr.mxu0 0.0
    %190 = vmatpush1.xpose.msra.mxu0 0.0
    %191 = vmatprep.subr.mxu0 0.0
    %192 = vmatpush1.xpose.msra.mxu0 0.0
    %193 = vmatprep.subr.mxu0 0.0
    %194 = vmatpush1.xpose.msra.mxu0 0.0
    %195 = vmatprep.subr.mxu0 0.0
    %196 = vmatpush1.xpose.msra.mxu0 0.0
    %197 = vmatprep.subr.mxu0 0.0
    %198 = vmatpush1.xpose.msra.mxu0 0.0
    %199 = vmatprep.subr.mxu0 0.0
    %200 = vmatpush1.xpose.msra.mxu0 0.0
    %201 = vmatprep.subr.mxu0 0.0
    %202 = vmatpush1.xpose.msra.mxu0 0.0
    %203 = vmatprep.subr.mxu0 0.0
    %204 = vmatpush1.xpose.msra.mxu0 0.0
    %205 = vmatprep.subr.mxu0 0.0
    %206 = vmatpush1.xpose.msra.mxu0 0.0
    %207 = vmatprep.subr.mxu0 0.0
    %208 = vmatpush1.xpose.msra.mxu0 %v177
    %209 = vmatprep.subr.mxu0 0.0
    %210 = vmatpush1.xpose.msra.mxu0 %v174
    %211 = vmatprep.subr.mxu0 0.0
    %212 = vmatpush2.xpose.msra.mxu0 0.0
    %213 = vmatprep.subr.mxu0 0.0
    %214 = vmatpush2.xpose.msra.mxu0 0.0
    %215 = vmatprep.subr.mxu0 0.0
    %216 = vmatpush2.xpose.msra.mxu0 0.0
    %217 = vmatprep.subr.mxu0 0.0
    %218 = vmatpush2.xpose.msra.mxu0 0.0
    %219 = vmatprep.subr.mxu0 0.0
    %220 = vmatpush2.xpose.msra.mxu0 0.0
    %221 = vmatprep.subr.mxu0 0.0
    %222 = vmatpush2.xpose.msra.mxu0 0.0
    %223 = vmatprep.subr.mxu0 0.0
    %224 = vmatpush2.xpose.msra.mxu0 0.0
    %225 = vmatprep.subr.mxu0 0.0
    %226 = vmatpush2.xpose.msra.mxu0 0.0
    %227 = vmatprep.subr.mxu0 0.0
    %228 = vmatpush2.xpose.msra.mxu0 0.0
    %229 = vmatprep.subr.mxu0 0.0
    %230 = vmatpush2.xpose.msra.mxu0 0.0
    %231 = vmatprep.subr.mxu0 0.0
    %232 = vmatpush2.xpose.msra.mxu0 0.0
    %233 = vmatprep.subr.mxu0 0.0
    %234 = vmatpush2.xpose.msra.mxu0 0.0
    %235 = vmatprep.subr.mxu0 0.0
    %236 = vmatpush2.xpose.msra.mxu0 0.0
    %237 = vmatprep.subr.mxu0 0.0
    %238 = vmatpush2.xpose.msra.mxu0 0.0
    %239 = vmatprep.subr.mxu0 0.0
    %240 = vmatpush2.xpose.msra.mxu0 0.0
    %241 = vmatprep.subr.mxu0 0.0
    %242 = vmatpush2.xpose.msra.mxu0 0.0
    %243 = vmatprep.mubr.f32.mxu0 0.0
    %244 = vmatmul.mubr.f32.gmra.mxu0 %v171
    %v245 = vpop.f32.mrf.mxu0
    %v246 = vadd.f32 0.0, %v245
    %v247 = vpop.f32.mrf.mxu0
    %248 = vdwg.mxu0
    %vm249 = vcmask 130048
    %v250 = vsel %vm249, %v167, -inf
    %251 = vmax.xlane.f32.xlu0 %v250
    %v252 = vpop.xlane.xlu0 %251
    %v253 = vsel %vm249, %v246, -inf
    %254 = vmax.xlane.f32.xlu0 %v253
    %v255 = vpop.xlane.xlu0 %254
    %v256 = vsub.f32 %v167, %v252
    %v257 = vsub.f32 %v246, %v255
    %v258 = vmul.f32 %v256, 1.442695
    %v259 = vpow.pop %v258
    %v260 = vmul.f32 %v257, 1.442695
    %v261 = vpow.pop %v260
    %v262 = vsel %vm249, %v259, 0.0
    %263 = vadd.xlane.f32.xlu0 %v262
    %v264 = vpop.xlane.xlu0 %263
    %v265 = vsel %vm249, %v261, 0.0
    %266 = vadd.xlane.f32.xlu0 %v265
    %v267 = vpop.xlane.xlu0 %266
    %v268 = vrcp.pop %v264
    %v269 = vmul.f32 %v259, %v268
    %v270 = vrcp.pop %v267
    %v271 = vmul.f32 %v261, %v270
    %v273 = vsel %vm249, %v269, 0
    %275 = vmatprep.subr.mxu0 0.0
    %276 = vmatpush1.msra.mxu0 0.0
    %277 = vmatprep.subr.mxu0 0.0
    %278 = vmatpush1.msra.mxu0 0.0
    %279 = vmatprep.subr.mxu0 0.0
    %280 = vmatpush1.msra.mxu0 0.0
    %281 = vmatprep.subr.mxu0 0.0
    %282 = vmatpush1.msra.mxu0 0.0
    %283 = vmatprep.subr.mxu0 0.0
    %284 = vmatpush1.msra.mxu0 0.0
    %285 = vmatprep.subr.mxu0 0.0
    %286 = vmatpush1.msra.mxu0 0.0
    %287 = vmatprep.subr.mxu0 0.0
    %288 = vmatpush1.msra.mxu0 0.0
    %289 = vmatprep.subr.mxu0 0.0
    %290 = vmatpush1.msra.mxu0 0.0
    %291 = vmatprep.subr.mxu0 0.0
    %292 = vmatpush1.msra.mxu0 0.0
    %293 = vmatprep.subr.mxu0 0.0
    %294 = vmatpush1.msra.mxu0 0.0
    %295 = vmatprep.subr.mxu0 0.0
    %296 = vmatpush1.msra.mxu0 0.0
    %297 = vmatprep.subr.mxu0 0.0
    %298 = vmatpush1.msra.mxu0 0.0
    %299 = vmatprep.subr.mxu0 0.0
    %300 = vmatpush1.msra.mxu0 0.0
    %301 = vmatprep.subr.mxu0 0.0
    %302 = vmatpush1.msra.mxu0 0.0
    %303 = vmatprep.subr.mxu0 0.0
    %304 = vmatpush1.msra.mxu0 %v87
    %305 = vmatprep.subr.mxu0 0.0
    %306 = vmatpush1.msra.mxu0 %v86
    %307 = vmatprep.subr.mxu0 0.0
    %308 = vmatpush2.msra.mxu0 0.0
    %309 = vmatprep.subr.mxu0 0.0
    %310 = vmatpush2.msra.mxu0 0.0
    %311 = vmatprep.subr.mxu0 0.0
    %312 = vmatpush2.msra.mxu0 0.0
    %313 = vmatprep.subr.mxu0 0.0
    %314 = vmatpush2.msra.mxu0 0.0
    %315 = vmatprep.subr.mxu0 0.0
    %316 = vmatpush2.msra.mxu0 0.0
    %317 = vmatprep.subr.mxu0 0.0
    %318 = vmatpush2.msra.mxu0 0.0
    %319 = vmatprep.subr.mxu0 0.0
    %320 = vmatpush2.msra.mxu0 0.0
    %321 = vmatprep.subr.mxu0 0.0
    %322 = vmatpush2.msra.mxu0 0.0
    %323 = vmatprep.subr.mxu0 0.0
    %324 = vmatpush2.msra.mxu0 0.0
    %325 = vmatprep.subr.mxu0 0.0
    %326 = vmatpush2.msra.mxu0 0.0
    %327 = vmatprep.subr.mxu0 0.0
    %328 = vmatpush2.msra.mxu0 0.0
    %329 = vmatprep.subr.mxu0 0.0
    %330 = vmatpush2.msra.mxu0 0.0
    %331 = vmatprep.subr.mxu0 0.0
    %332 = vmatpush2.msra.mxu0 0.0
    %333 = vmatprep.subr.mxu0 0.0
    %334 = vmatpush2.msra.mxu0 0.0
    %335 = vmatprep.subr.mxu0 0.0
    %336 = vmatpush2.msra.mxu0 0.0
    %337 = vmatprep.subr.mxu0 0.0
    %338 = vmatpush2.msra.mxu0 0.0
    %339 = vmatprep.mubr.f32.mxu0 0.0
    %340 = vmatmul.mubr.f32.gmra.mxu0 %v273
    %v341 = vpop.f32.mrf.mxu0
    %v342 = vadd.f32 0.0, %v341
    %v343 = vpop.f32.mrf.mxu0
    %344 = vdwg.mxu0
    %v346 = vsel %vm249, %v271, 0
    %348 = vmatprep.subr.mxu0 0.0
    %349 = vmatpush1.msra.mxu0 0.0
    %350 = vmatprep.subr.mxu0 0.0
    %351 = vmatpush1.msra.mxu0 0.0
    %352 = vmatprep.subr.mxu0 0.0
    %353 = vmatpush1.msra.mxu0 0.0
    %354 = vmatprep.subr.mxu0 0.0
    %355 = vmatpush1.msra.mxu0 0.0
    %356 = vmatprep.subr.mxu0 0.0
    %357 = vmatpush1.msra.mxu0 0.0
    %358 = vmatprep.subr.mxu0 0.0
    %359 = vmatpush1.msra.mxu0 0.0
    %360 = vmatprep.subr.mxu0 0.0
    %361 = vmatpush1.msra.mxu0 0.0
    %362 = vmatprep.subr.mxu0 0.0
    %363 = vmatpush1.msra.mxu0 0.0
    %364 = vmatprep.subr.mxu0 0.0
    %365 = vmatpush1.msra.mxu0 0.0
    %366 = vmatprep.subr.mxu0 0.0
    %367 = vmatpush1.msra.mxu0 0.0
    %368 = vmatprep.subr.mxu0 0.0
    %369 = vmatpush1.msra.mxu0 0.0
    %370 = vmatprep.subr.mxu0 0.0
    %371 = vmatpush1.msra.mxu0 0.0
    %372 = vmatprep.subr.mxu0 0.0
    %373 = vmatpush1.msra.mxu0 0.0
    %374 = vmatprep.subr.mxu0 0.0
    %375 = vmatpush1.msra.mxu0 0.0
    %376 = vmatprep.subr.mxu0 0.0
    %377 = vmatpush1.msra.mxu0 %v89
    %378 = vmatprep.subr.mxu0 0.0
    %379 = vmatpush1.msra.mxu0 %v88
    %380 = vmatprep.subr.mxu0 0.0
    %381 = vmatpush2.msra.mxu0 0.0
    %382 = vmatprep.subr.mxu0 0.0
    %383 = vmatpush2.msra.mxu0 0.0
    %384 = vmatprep.subr.mxu0 0.0
    %385 = vmatpush2.msra.mxu0 0.0
    %386 = vmatprep.subr.mxu0 0.0
    %387 = vmatpush2.msra.mxu0 0.0
    %388 = vmatprep.subr.mxu0 0.0
    %389 = vmatpush2.msra.mxu0 0.0
    %390 = vmatprep.subr.mxu0 0.0
    %391 = vmatpush2.msra.mxu0 0.0
    %392 = vmatprep.subr.mxu0 0.0
    %393 = vmatpush2.msra.mxu0 0.0
    %394 = vmatprep.subr.mxu0 0.0
    %395 = vmatpush2.msra.mxu0 0.0
    %396 = vmatprep.subr.mxu0 0.0
    %397 = vmatpush2.msra.mxu0 0.0
    %398 = vmatprep.subr.mxu0 0.0
    %399 = vmatpush2.msra.mxu0 0.0
    %400 = vmatprep.subr.mxu0 0.0
    %401 = vmatpush2.msra.mxu0 0.0
    %402 = vmatprep.subr.mxu0 0.0
    %403 = vmatpush2.msra.mxu0 0.0
    %404 = vmatprep.subr.mxu0 0.0
    %405 = vmatpush2.msra.mxu0 0.0
    %406 = vmatprep.subr.mxu0 0.0
    %407 = vmatpush2.msra.mxu0 0.0
    %408 = vmatprep.subr.mxu0 0.0
    %409 = vmatpush2.msra.mxu0 0.0
    %410 = vmatprep.subr.mxu0 0.0
    %411 = vmatpush2.msra.mxu0 0.0
    %412 = vmatprep.mubr.f32.mxu0 0.0
    %413 = vmatmul.mubr.f32.gmra.mxu0 %v346
    %v414 = vpop.f32.mrf.mxu0
    %v415 = vadd.f32 0.0, %v414
    %v416 = vpop.f32.mrf.mxu0
    %417 = vdwg.mxu0
    %v418 = vld [vmem:[#allocation8] sm:$0xff]
    %v419 = vld [vmem:[#allocation8 + $0x8] sm:$0xff]
    %v420 = vld [vmem:[#allocation8 + $0x10] sm:$0xff]
    %v421 = vld [vmem:[#allocation8 + $0x18] sm:$0xff]
    %v422 = vld [vmem:[#allocation9] sm:$0xff]
    %v423 = vld [vmem:[#allocation9 + $0x8] sm:$0xff]
    %v424 = vld [vmem:[#allocation9 + $0x10] sm:$0xff]
    %v425 = vld [vmem:[#allocation9 + $0x18] sm:$0xff]
    %426 = vmatprep.subr.mxu0 0.0
    %427 = vmatpush1.msra.mxu0 0.0
    %428 = vmatprep.subr.mxu0 0.0
    %429 = vmatpush1.msra.mxu0 0.0
    %430 = vmatprep.subr.mxu0 0.0
    %431 = vmatpush1.msra.mxu0 0.0
    %432 = vmatprep.subr.mxu0 0.0
    %433 = vmatpush1.msra.mxu0 0.0
    %434 = vmatprep.subr.mxu0 0.0
    %435 = vmatpush1.msra.mxu0 0.0
    %436 = vmatprep.subr.mxu0 0.0
    %437 = vmatpush1.msra.mxu0 0.0
    %438 = vmatprep.subr.mxu0 0.0
    %439 = vmatpush1.msra.mxu0 0.0
    %440 = vmatprep.subr.mxu0 0.0
    %441 = vmatpush1.msra.mxu0 0.0
    %442 = vmatprep.subr.mxu0 0.0
    %443 = vmatpush1.msra.mxu0 0.0
    %444 = vmatprep.subr.mxu0 0.0
    %445 = vmatpush1.msra.mxu0 0.0
    %446 = vmatprep.subr.mxu0 0.0
    %447 = vmatpush1.msra.mxu0 0.0
    %448 = vmatprep.subr.mxu0 0.0
    %449 = vmatpush1.msra.mxu0 0.0
    %450 = vmatprep.subr.mxu0 0.0
    %451 = vmatpush1.msra.mxu0 %v425
    %452 = vmatprep.subr.mxu0 0.0
    %453 = vmatpush1.msra.mxu0 %v424
    %454 = vmatprep.subr.mxu0 0.0
    %455 = vmatpush1.msra.mxu0 %v423
    %456 = vmatprep.subr.mxu0 0.0
    %457 = vmatpush1.msra.mxu0 %v422
    %458 = vmatprep.subr.mxu0 0.0
    %459 = vmatpush2.msra.mxu0 0.0
    %460 = vmatprep.subr.mxu0 0.0
    %461 = vmatpush2.msra.mxu0 0.0
    %462 = vmatprep.subr.mxu0 0.0
    %463 = vmatpush2.msra.mxu0 0.0
    %464 = vmatprep.subr.mxu0 0.0
    %465 = vmatpush2.msra.mxu0 0.0
    %466 = vmatprep.subr.mxu0 0.0
    %467 = vmatpush2.msra.mxu0 0.0
    %468 = vmatprep.subr.mxu0 0.0
    %469 = vmatpush2.msra.mxu0 0.0
    %470 = vmatprep.subr.mxu0 0.0
    %471 = vmatpush2.msra.mxu0 0.0
    %472 = vmatprep.subr.mxu0 0.0
    %473 = vmatpush2.msra.mxu0 0.0
    %474 = vmatprep.subr.mxu0 0.0
    %475 = vmatpush2.msra.mxu0 0.0
    %476 = vmatprep.subr.mxu0 0.0
    %477 = vmatpush2.msra.mxu0 0.0
    %478 = vmatprep.subr.mxu0 0.0
    %479 = vmatpush2.msra.mxu0 0.0
    %480 = vmatprep.subr.mxu0 0.0
    %481 = vmatpush2.msra.mxu0 0.0
    %482 = vmatprep.subr.mxu0 0.0
    %483 = vmatpush2.msra.mxu0 0.0
    %484 = vmatprep.subr.mxu0 0.0
    %485 = vmatpush2.msra.mxu0 0.0
    %486 = vmatprep.subr.mxu0 0.0
    %487 = vmatpush2.msra.mxu0 0.0
    %488 = vmatprep.subr.mxu0 0.0
    %489 = vmatpush2.msra.mxu0 0.0
    %490 = vmatprep.mubr.f32.mxu0 0.0
    %491 = vmatmul.mubr.f32.gmra.mxu0 %v92
    %v492 = vpop.f32.mrf.mxu0
    %v493 = vadd.f32 0.0, %v492
    %v494 = vpop.f32.mrf.mxu0
    %495 = vmatprep.mubr.f32.mxu0 0.0
    %496 = vmatmul.mubr.f32.gmra.mxu0 %v171
    %v497 = vpop.f32.mrf.mxu0
    %v498 = vadd.f32 0.0, %v497
    %v499 = vpop.f32.mrf.mxu0
    %500 = vdwg.mxu0
    %v502 = vsel %vm90, %v342, 0
    %v505 = vsel %vm90, %v415, 0
    %507 = vmatprep.subr.mxu0 0.0
    %508 = vmatpush1.msra.mxu0 0.0
    %509 = vmatprep.subr.mxu0 0.0
    %510 = vmatpush1.msra.mxu0 0.0
    %511 = vmatprep.subr.mxu0 0.0
    %512 = vmatpush1.msra.mxu0 0.0
    %513 = vmatprep.subr.mxu0 0.0
    %514 = vmatpush1.msra.mxu0 0.0
    %515 = vmatprep.subr.mxu0 0.0
    %516 = vmatpush1.msra.mxu0 0.0
    %517 = vmatprep.subr.mxu0 0.0
    %518 = vmatpush1.msra.mxu0 0.0
    %519 = vmatprep.subr.mxu0 0.0
    %520 = vmatpush1.msra.mxu0 0.0
    %521 = vmatprep.subr.mxu0 0.0
    %522 = vmatpush1.msra.mxu0 0.0
    %523 = vmatprep.subr.mxu0 0.0
    %524 = vmatpush1.msra.mxu0 0.0
    %525 = vmatprep.subr.mxu0 0.0
    %526 = vmatpush1.msra.mxu0 0.0
    %527 = vmatprep.subr.mxu0 0.0
    %528 = vmatpush1.msra.mxu0 0.0
    %529 = vmatprep.subr.mxu0 0.0
    %530 = vmatpush1.msra.mxu0 0.0
    %531 = vmatprep.subr.mxu0 0.0
    %532 = vmatpush1.msra.mxu0 %v421
    %533 = vmatprep.subr.mxu0 0.0
    %534 = vmatpush1.msra.mxu0 %v420
    %535 = vmatprep.subr.mxu0 0.0
    %536 = vmatpush1.msra.mxu0 %v419
    %537 = vmatprep.subr.mxu0 0.0
    %538 = vmatpush1.msra.mxu0 %v418
    %539 = vmatprep.subr.mxu0 0.0
    %540 = vmatpush2.msra.mxu0 0.0
    %541 = vmatprep.subr.mxu0 0.0
    %542 = vmatpush2.msra.mxu0 0.0
    %543 = vmatprep.subr.mxu0 0.0
    %544 = vmatpush2.msra.mxu0 0.0
    %545 = vmatprep.subr.mxu0 0.0
    %546 = vmatpush2.msra.mxu0 0.0
    %547 = vmatprep.subr.mxu0 0.0
    %548 = vmatpush2.msra.mxu0 0.0
    %549 = vmatprep.subr.mxu0 0.0
    %550 = vmatpush2.msra.mxu0 0.0
    %551 = vmatprep.subr.mxu0 0.0
    %552 = vmatpush2.msra.mxu0 0.0
    %553 = vmatprep.subr.mxu0 0.0
    %554 = vmatpush2.msra.mxu0 0.0
    %555 = vmatprep.subr.mxu0 0.0
    %556 = vmatpush2.msra.mxu0 0.0
    %557 = vmatprep.subr.mxu0 0.0
    %558 = vmatpush2.msra.mxu0 0.0
    %559 = vmatprep.subr.mxu0 0.0
    %560 = vmatpush2.msra.mxu0 0.0
    %561 = vmatprep.subr.mxu0 0.0
    %562 = vmatpush2.msra.mxu0 0.0
    %563 = vmatprep.subr.mxu0 0.0
    %564 = vmatpush2.msra.mxu0 0.0
    %565 = vmatprep.subr.mxu0 0.0
    %566 = vmatpush2.msra.mxu0 0.0
    %567 = vmatprep.subr.mxu0 0.0
    %568 = vmatpush2.msra.mxu0 0.0
    %569 = vmatprep.subr.mxu0 0.0
    %570 = vmatpush2.msra.mxu0 0.0
    %571 = vmatprep.mubr.f32.mxu0 0.0
    %572 = vmatmul.mubr.f32.gmra.mxu0 %v502
    %v573 = vpop.f32.mrf.mxu0
    %v574 = vadd.f32 %v493, %v573
    %v575 = vpop.f32.mrf.mxu0
    %576 = vmatprep.mubr.f32.mxu0 0.0
    %577 = vmatmul.mubr.f32.gmra.mxu0 %v505
    %v578 = vpop.f32.mrf.mxu0
    %v579 = vadd.f32 %v498, %v578
    %v580 = vpop.f32.mrf.mxu0
    %581 = vdwg.mxu0
    %v582 = vld [vmem:[%s4] sm:$0x1]
    %v584 = vlaneseq
    %v585 = vshrl.u32 %v584, 7
    %v586 = vsub.s32 0, %v585
    %v587 = vrot.slane %v582, %v586
    %v589 = vadd.f32 %v574, %v587
    %v590 = vadd.f32 %v579, %v587
    %v591 = vtanh.pop %v589
    %v592 = vtanh.pop %v590
    %v593 = vld [vmem:[%s5] sm:$0x1]
    %v595 = vlaneseq
    %v596 = vshrl.u32 %v595, 7
    %v597 = vsub.s32 0, %v596
    %v598 = vrot.slane %v593, %v597
    %v600 = vmul.f32 %v591, %v598
    %v601 = vmul.f32 %v592, %v598
    %v602 = vsel %vm90, %v600, 0.0
    %603 = vadd.xlane.f32.xlu0 %v602
    %v604 = vpop.xlane.xlu0 %603
    %v605 = vsel %vm90, %v601, 0.0
    %606 = vadd.xlane.f32.xlu0 %v605
    %v607 = vpop.xlane.xlu0 %606
    %v608 = vld [vmem:[#allocation2] sm:$0x1]
    %v610 = vlaneseq
    %v611 = vshrl.u32 %v610, 7
    %v612 = vsub.s32 0, %v611
    %v613 = vrot.slane %v608, %v612
    %614 = vset.pattern.permute.xlu0 0
    %615 = vperm.xlu0 %614, %v613
    %v616 = vpop.permute.xlu0 %615
    %v618 = vadd.f32 %v604, %v616
    %v619 = vadd.f32 %v607, %v616
    %v622 = vlaneseq
    %v623 = vand.u32 %v622, 127
    %v624 = vlaneseq
    %v625 = vshrl.u32 %v624, 7
    %v626 = vsub.s32 %v623, %v625
    %v627 = vrot.slane %v618, %v626
    %v628 = vlaneseq
    %v629 = vshrl.u32 %v628, 7
    %v630 = vsub.s32 %v623, %v629
    %v631 = vrot.slane %v619, %v630
    %vm632 = vcmask 1041409
    %v633 = vsel %vm632, %v631, %v627
    %vm635 = vcmask 58368
    %636 = vst.msk [vmem:[#allocation11] sm:$0x3] %vm635, %v633
    // Predicated region
    $region46: #{tpu_custom_call.1} parent=1 // pred_check
      _
    $region47: #{tpu_custom_call.1} parent=1 // pred_check_branch
      %638 = sbr.rel (0) target = $region49
    $region48: #{tpu_custom_call.1} parent=1 // pred_region
      %s640 = ssub.s32 32, 32
      %641 = vsyncadd [#allocation5], %s640
      %s643 = sshll.u32 [#allocation11], 4
      %s644 = int_to_ptr.vmem [resolvable:$true] %s643
      %646 = dma.vmem_to_hbm [thread:$0]  %s644, 32, %s7, [#allocation5]
    $region49: #{tpu_custom_call.1} parent=1 // pred_fallthru
      _
    // Predicated region
    $region50: #{tpu_custom_call.1} parent=1 // pred_check
      _
    $region51: #{tpu_custom_call.1} parent=1 // pred_check_branch
      %648 = sbr.rel (0) target = $region53
    $region52: #{tpu_custom_call.1} parent=1 // pred_region
      %649 = dma.done [#allocation5], 32
    $region53: #{tpu_custom_call.1} parent=1 // pred_fallthru
      _
    %650 = vsyncpa [#allocation4], 1
    %651 = vsyncpa [#allocation7], 1
    %652 = vsyncpa [#allocation10], 1
    %653 = vsyncpa [#allocation5], 1

</llo_original>
